<compile_context>
chip_gen: v5e
topology: v5e:2x2
jax: 0.10.0
libtpu: 0.0.40
codegen_flags: <defaults>
</compile_context>

<pallas_src>
import functools

import jax
import jax.numpy as jnp
from jax import lax
from jax.experimental import pallas as pl
from jax.experimental.pallas import tpu as pltpu


def cam_kernel(patch_ref, wemb_ref, bemb_ref, fcwT_ref, fcb_ref,
               pred_ref, cam_ref, *, bb, hw):
    """Processes `bb` batch elements per grid step.

    patch_ref: (bb*hw, Pp)  bf16 flattened + zero-padded image patches
    wemb_ref : (Pp, C)      bf16 patch-embedding weight (backbone stand-in)
    bemb_ref : (1, C)       f32  patch-embedding bias
    fcwT_ref : (C, K)       bf16 fc weight, transposed (torch fc.weight is (K, C))
    fcb_ref  : (1, K)       f32  fc bias
    pred_ref : (bb, K)      f32  logits
    cam_ref  : (bb, hw)     f32  CAM, spatial axis lane-dense
    """
    # --- backbone stand-in: patch embedding (bf16 MXU, f32 accum) + ReLU ---
    feat = jnp.dot(patch_ref[...], wemb_ref[...],
                   preferred_element_type=jnp.float32)         # (bb*hw, C) f32
    feat = jnp.maximum(feat + bemb_ref[...], 0.0)
    c = feat.shape[1]
    feat3 = feat.reshape(bb, hw, c)                             # (bb, hw, C)

    # --- resnet head: global average pool + fc (all bb rows at once) ---
    gap = jnp.mean(feat3, axis=1)                               # (bb, C) f32
    fcw = fcwT_ref[...].astype(jnp.float32)                     # (C, K) f32
    logits = jnp.dot(gap, fcw,
                     preferred_element_type=jnp.float32) + fcb_ref[...]  # (bb, K)
    pred_ref[...] = logits

    # --- cam_generator: top-1 class (== descending sort, take column 0) ---
    k = logits.shape[1]
    k_idx = lax.broadcasted_iota(jnp.int32, logits.shape, 1)    # (bb, K)
    m = jnp.max(logits, axis=1, keepdims=True)                  # (bb, 1)
    top = jnp.min(jnp.where(logits == m, k_idx, k),
                  axis=1, keepdims=True)                        # (bb, 1)
    onehot = (k_idx == top).astype(jnp.float32)                 # (bb, K)

    # gather the selected fc weight row per batch element: (bb, C)
    sel_w = jnp.einsum("bk,ck->bc", onehot, fcw,
                       preferred_element_type=jnp.float32)

    # CAM: VPU multiply + lane reduction (avoids an N=1 MXU matmul);
    # result is lane-dense (bb, hw) -> unmasked stores.
    cam_ref[...] = jnp.sum(feat3 * sel_w[:, None, :], axis=-1)


def extract_patches(img, ps):
    B, Cin, Hi, Wi = img.shape
    H, W = Hi // ps, Wi // ps
    # (B, Cin, H, ps, W, ps) -> (B, H, W, Cin, ps, ps) -> (B, HW, Cin*ps*ps)
    p = img.reshape(B, Cin, H, ps, W, ps).transpose(0, 2, 4, 1, 3, 5)
    return p.reshape(B, H * W, Cin * ps * ps), H, W


@functools.partial(jax.jit, static_argnames=("patch_size", "block_b"))
def cam_forward(img, wemb, bemb, fcwT, fcb, *, patch_size, block_b):
    B = img.shape[0]
    patches, H, W = extract_patches(img, patch_size)
    _, HW, P = patches.shape
    Cf = wemb.shape[1]
    K = fcwT.shape[1]
    assert B % block_b == 0 and (B // block_b) >= 1

    # Pad the contraction depth to a multiple of 128 (full MXU tiles).
    Pp = ((P + 127) // 128) * 128
    patches = jnp.pad(patches, ((0, 0), (0, 0), (0, Pp - P)))
    wemb_p = jnp.pad(wemb, ((0, Pp - P), (0, 0)))

    # bf16 operands for the streamed patch slab and the replicated weights;
    # matmuls accumulate in f32 (preferred_element_type).
    patches2d = patches.reshape(B * HW, Pp).astype(jnp.bfloat16)
    wemb_bf16 = wemb_p.astype(jnp.bfloat16)
    fcwT_bf16 = fcwT.astype(jnp.bfloat16)

    kernel = functools.partial(cam_kernel, bb=block_b, hw=HW)
    pred, cam2d = pl.pallas_call(
        kernel,
        out_shape=(jax.ShapeDtypeStruct((B, K), jnp.float32),
                   jax.ShapeDtypeStruct((B, HW), jnp.float32)),
        grid=(B // block_b,),
        in_specs=[
            pl.BlockSpec((block_b * HW, Pp), lambda b: (b, 0)),
            # Weights: constant index_map (fetched once per pipeline).  At
            # resnet scale, add pipeline_mode=pl.Buffered(1) to single-buffer
            # them; irrelevant at these demo sizes.
            pl.BlockSpec((Pp, Cf), lambda b: (0, 0)),
            pl.BlockSpec((1, Cf), lambda b: (0, 0)),
            pl.BlockSpec((Cf, K), lambda b: (0, 0)),
            pl.BlockSpec((1, K), lambda b: (0, 0)),
        ],
        out_specs=(
            pl.BlockSpec((block_b, K), lambda b: (b, 0)),
            pl.BlockSpec((block_b, HW), lambda b: (b, 0)),
        ),
        compiler_params=pltpu.CompilerParams(
            dimension_semantics=("parallel",),        # keeps both v7x TCs busy
            vmem_limit_bytes=32 * 1024 * 1024),       # explicit VMEM budget
    )(patches2d, wemb_bf16, bemb, fcwT_bf16, fcb)

    cam = cam2d.reshape(B, 1, H, W)   # matches cams.view(B, 1, H, W)
    return cam, pred


def cam_reference(img, wemb, bemb, fcwT, fcb, *, patch_size):
    """Pure-JAX reference mirroring the PyTorch semantics.

    Uses the same bf16-quantized operands as the kernel (accumulation in f32,
    precision=HIGHEST) so the top-1 class selection matches deterministically.
    """
    B = img.shape[0]
    hp = lax.Precision.HIGHEST
    patches, H, W = extract_patches(img, patch_size)
    p = patches.astype(jnp.bfloat16).astype(jnp.float32)
    w = wemb.astype(jnp.bfloat16).astype(jnp.float32)
    fw = fcwT.astype(jnp.bfloat16).astype(jnp.float32)
    feat = jnp.maximum(
        jnp.einsum("bqp,pc->bqc", p, w, precision=hp) + bemb, 0.0)  # (B, HW, C)
    gap = feat.mean(axis=1)                                          # (B, C)
    pred = jnp.einsum("bc,ck->bk", gap, fw, precision=hp) + fcb[0]   # (B, K)
    top = jnp.argmax(pred, axis=1)                                   # (B,)
    sel_w = fw.T[top]                                                # (B, C)
    cam = jnp.einsum("bc,bqc->bq", sel_w, feat, precision=hp)        # (B, HW)
    return cam.reshape(B, 1, H, W), pred


if __name__ == "__main__":
    # Small, ImageNet-like-but-tiny shapes.
    B, Cin, Hi, Wi = 16, 3, 32, 32       # input images, NCHW
    ps = 4                               # patch size -> 8x8 feature grid (HW=64)
    Cf = 128                             # feature channels (resnet18 uses 512)
    K = 16                               # number of classes (resnet18: 1000)
    Bb = 8                               # batch elements per grid step (grid=2)
    P = Cin * ps * ps

    key = jax.random.PRNGKey(0)
    k_img, k_wemb, k_bemb, k_fcw, k_fcb = jax.random.split(key, 5)

    img = jax.random.normal(k_img, (B, Cin, Hi, Wi), dtype=jnp.float32)
    wemb = 0.1 * jax.random.normal(k_wemb, (P, Cf), dtype=jnp.float32)
    bemb = 0.1 * jax.random.normal(k_bemb, (1, Cf), dtype=jnp.float32)
    fcwT = 0.1 * jax.random.normal(k_fcw, (Cf, K), dtype=jnp.float32)  # fc.weight.T
    fcb = 0.1 * jax.random.normal(k_fcb, (1, K), dtype=jnp.float32)

    cam, pred = cam_forward(img, wemb, bemb, fcwT, fcb,
                            patch_size=ps, block_b=Bb)
    jax.block_until_ready((cam, pred))

    cam_ref, pred_ref = cam_reference(img, wemb, bemb, fcwT, fcb, patch_size=ps)
    assert cam.shape == (B, 1, Hi // ps, Wi // ps)
    assert pred.shape == (B, K)
    assert jnp.allclose(pred, pred_ref, atol=1e-2, rtol=1e-2)
    assert jnp.allclose(cam, cam_ref, atol=1e-2, rtol=1e-2)

    print("KERNEL_OK")
</pallas_src>

<mosaic_0001>
module attributes {stable_mosaic.version = 11 : i64} {
  func.func @cam_kernel(%arg0: i32, %arg1: memref<512x128xbf16, #tpu.memory_space<vmem>>, %arg2: memref<128x128xbf16, #tpu.memory_space<vmem>>, %arg3: memref<1x128xf32, #tpu.memory_space<vmem>>, %arg4: memref<128x16xbf16, #tpu.memory_space<vmem>>, %arg5: memref<1x16xf32, #tpu.memory_space<vmem>>, %arg6: memref<8x16xf32, #tpu.memory_space<vmem>>, %arg7: memref<8x64xf32, #tpu.memory_space<vmem>>) attributes {dimension_semantics = [#tpu.dimension_semantics<parallel>], iteration_bounds = array<i64: 2>, scalar_prefetch = 0 : i64, scratch_operands = 0 : i64, tpu.core_type = #tpu.core_type<tc>, window_params = [{transform_indices = @transform_0, window_bounds = array<i64: 512, 128>}, {pipeline_mode = #tpu.pipeline_mode<synchronous>, transform_indices = @transform_1, window_bounds = array<i64: 128, 128>}, {pipeline_mode = #tpu.pipeline_mode<synchronous>, transform_indices = @transform_2, window_bounds = array<i64: 1, 128>}, {pipeline_mode = #tpu.pipeline_mode<synchronous>, transform_indices = @transform_3, window_bounds = array<i64: 128, 16>}, {pipeline_mode = #tpu.pipeline_mode<synchronous>, transform_indices = @transform_4, window_bounds = array<i64: 1, 16>}, {transform_indices = @transform_5, window_bounds = array<i64: 8, 16>}, {transform_indices = @transform_6, window_bounds = array<i64: 8, 64>}]} {
    %c0 = arith.constant 0 : index
    %c0_0 = arith.constant 0 : index
    %0 = vector.load %arg1[%c0, %c0_0] : memref<512x128xbf16, #tpu.memory_space<vmem>>, vector<512x128xbf16>
    %c0_1 = arith.constant 0 : index
    %c0_2 = arith.constant 0 : index
    %1 = vector.load %arg2[%c0_1, %c0_2] : memref<128x128xbf16, #tpu.memory_space<vmem>>, vector<128x128xbf16>
    %cst = arith.constant dense<0.000000e+00> : vector<512x128xf32>
    %2 = tpu.matmul %0, %1, %cst {dimension_numbers = #tpu.dot_dimension_numbers<[1], [0], [0], [1], [0, 0, 1, 1], [], []>} : vector<512x128xbf16>, vector<128x128xbf16>, vector<512x128xf32> -> vector<512x128xf32>
    %c0_3 = arith.constant 0 : index
    %c0_4 = arith.constant 0 : index
    %3 = vector.load %arg3[%c0_3, %c0_4] : memref<1x128xf32, #tpu.memory_space<vmem>>, vector<1x128xf32>
    %4 = vector.broadcast %3 : vector<1x128xf32> to vector<512x128xf32>
    %5 = arith.addf %2, %4 : vector<512x128xf32>
    %cst_5 = arith.constant 0.000000e+00 : f32
    %6 = vector.broadcast %cst_5 : f32 to vector<512x128xf32>
    %7 = arith.maximumf %5, %6 : vector<512x128xf32>
    %8 = vector.shape_cast %7 : vector<512x128xf32> to vector<8x64x128xf32>
    %cst_6 = arith.constant dense<0.000000e+00> : vector<8x128xf32>
    %9 = vector.multi_reduction <add>, %8, %cst_6 [1] : vector<8x64x128xf32> to vector<8x128xf32>
    %cst_7 = arith.constant 6.400000e+01 : f32
    %10 = vector.broadcast %cst_7 : f32 to vector<8x128xf32>
    %11 = arith.divf %9, %10 : vector<8x128xf32>
    %c0_8 = arith.constant 0 : index
    %c0_9 = arith.constant 0 : index
    %12 = vector.load %arg4[%c0_8, %c0_9] : memref<128x16xbf16, #tpu.memory_space<vmem>>, vector<128x16xbf16>
    %13 = arith.extf %12 : vector<128x16xbf16> to vector<128x16xf32>
    %cst_10 = arith.constant dense<0.000000e+00> : vector<8x16xf32>
    %14 = tpu.matmul %11, %13, %cst_10 {dimension_numbers = #tpu.dot_dimension_numbers<[1], [0], [0], [1], [0, 0, 1, 1], [], []>} : vector<8x128xf32>, vector<128x16xf32>, vector<8x16xf32> -> vector<8x16xf32>
    %c0_11 = arith.constant 0 : index
    %c0_12 = arith.constant 0 : index
    %15 = vector.load %arg5[%c0_11, %c0_12] : memref<1x16xf32, #tpu.memory_space<vmem>>, vector<1x16xf32>
    %16 = vector.broadcast %15 : vector<1x16xf32> to vector<8x16xf32>
    %17 = arith.addf %14, %16 : vector<8x16xf32>
    %c0_13 = arith.constant 0 : index
    %c0_14 = arith.constant 0 : index
    %18 = vector.load %arg6[%c0_13, %c0_14] : memref<8x16xf32, #tpu.memory_space<vmem>>, vector<8x16xf32>
    tpu.vector_store %arg6[%c0_13, %c0_14], %17 {strides = array<i32>} : memref<8x16xf32, #tpu.memory_space<vmem>>, vector<8x16xf32>,
    %19 = tpu.iota {dimensions = array<i32: 1>} : vector<8x16xi32>
    %cst_15 = arith.constant dense<0xFF800000> : vector<8xf32>
    %20 = vector.multi_reduction <maximumf>, %17, %cst_15 [1] : vector<8x16xf32> to vector<8xf32>
    %21 = vector.shape_cast %20 : vector<8xf32> to vector<8x1xf32>
    %22 = vector.broadcast %21 : vector<8x1xf32> to vector<8x16xf32>
    %23 = arith.cmpf oeq, %17, %22 : vector<8x16xf32>
    %c16_i32 = arith.constant 16 : i32
    %24 = vector.broadcast %c16_i32 : i32 to vector<8x16xi32>
    %25 = arith.select %23, %19, %24 : vector<8x16xi1>, vector<8x16xi32>
    %cst_16 = arith.constant dense<2147483647> : vector<8xi32>
    %26 = vector.multi_reduction <minsi>, %25, %cst_16 [1] : vector<8x16xi32> to vector<8xi32>
    %27 = vector.shape_cast %26 : vector<8xi32> to vector<8x1xi32>
    %28 = vector.broadcast %27 : vector<8x1xi32> to vector<8x16xi32>
    %29 = arith.cmpi eq, %19, %28 : vector<8x16xi32>
    %30 = arith.extui %29 : vector<8x16xi1> to vector<8x16xi32>
    %31 = arith.sitofp %30 : vector<8x16xi32> to vector<8x16xf32>
    "tpu.trace_start"() <{level = 10 : i32, message = "bk,ck->bc"}> : () -> ()
    %cst_17 = arith.constant dense<0.000000e+00> : vector<8x128xf32>
    %32 = tpu.matmul %31, %13, %cst_17 {dimension_numbers = #tpu.dot_dimension_numbers<[1], [1], [0], [0], [0, 0, 1, 0], [], []>} : vector<8x16xf32>, vector<128x16xf32>, vector<8x128xf32> -> vector<8x128xf32>
    "tpu.trace_stop"() : () -> ()
    %33 = vector.shape_cast %32 : vector<8x128xf32> to vector<8x1x128xf32>
    %34 = vector.broadcast %33 : vector<8x1x128xf32> to vector<8x64x128xf32>
    %35 = arith.mulf %8, %34 : vector<8x64x128xf32>
    %cst_18 = arith.constant dense<0.000000e+00> : vector<8x64xf32>
    %36 = vector.multi_reduction <add>, %35, %cst_18 [2] : vector<8x64x128xf32> to vector<8x64xf32>
    %c0_19 = arith.constant 0 : index
    %c0_20 = arith.constant 0 : index
    %37 = vector.load %arg7[%c0_19, %c0_20] : memref<8x64xf32, #tpu.memory_space<vmem>>, vector<8x64xf32>
    tpu.vector_store %arg7[%c0_19, %c0_20], %36 {strides = array<i32>} : memref<8x64xf32, #tpu.memory_space<vmem>>, vector<8x64xf32>,
    return
  }
  func.func @transform_0(%arg0: i32) -> (i32, i32) {
    %c0_i32 = arith.constant 0 : i32
    %c0_i32_0 = arith.constant 0 : i32
    return %arg0, %c0_i32 : i32, i32
  }
  func.func @transform_1(%arg0: i32) -> (i32, i32) {
    %c0_i32 = arith.constant 0 : i32
    %c0_i32_0 = arith.constant 0 : i32
    %c0_i32_1 = arith.constant 0 : i32
    return %c0_i32, %c0_i32_0 : i32, i32
  }
  func.func @transform_2(%arg0: i32) -> (i32, i32) {
    %c0_i32 = arith.constant 0 : i32
    %c0_i32_0 = arith.constant 0 : i32
    %c0_i32_1 = arith.constant 0 : i32
    return %c0_i32, %c0_i32_0 : i32, i32
  }
  func.func @transform_3(%arg0: i32) -> (i32, i32) {
    %c0_i32 = arith.constant 0 : i32
    %c0_i32_0 = arith.constant 0 : i32
    %c0_i32_1 = arith.constant 0 : i32
    return %c0_i32, %c0_i32_0 : i32, i32
  }
  func.func @transform_4(%arg0: i32) -> (i32, i32) {
    %c0_i32 = arith.constant 0 : i32
    %c0_i32_0 = arith.constant 0 : i32
    %c0_i32_1 = arith.constant 0 : i32
    return %c0_i32, %c0_i32_0 : i32, i32
  }
  func.func @transform_5(%arg0: i32) -> (i32, i32) {
    %c0_i32 = arith.constant 0 : i32
    %c0_i32_0 = arith.constant 0 : i32
    return %arg0, %c0_i32 : i32, i32
  }
  func.func @transform_6(%arg0: i32) -> (i32, i32) {
    %c0_i32 = arith.constant 0 : i32
    %c0_i32_0 = arith.constant 0 : i32
    return %arg0, %c0_i32 : i32, i32
  }
}

</mosaic_0001>

<llo_original>
// kernel: cam_forward.1
$region0: #{cam_forward.1}
  #allocation0 [shape = 'u32[]', space=smem, size = 0x4, offset = 0x4, fixed_abs, tag = 'smem constant byte address 0x4 - core index']
  #allocation1 [shape = 'u32[72,128]{1,0:T(1,128)}', space=vmem, size = 0x9000, scoped, tag = 'internal scratch']
  %s0 = inlined_call_operand.vmem [shape: bf16[1024,128], index: 0, kind: input, shape index: {}]
  %s1 = inlined_call_operand.vmem [shape: bf16[128,128], index: 1, kind: input, shape index: {}]
  %s2 = inlined_call_operand.vmem [shape: f32[1,128], index: 2, kind: input, shape index: {}]
  %s3 = inlined_call_operand.vmem [shape: bf16[128,16], index: 3, kind: input, shape index: {}]
  %s4 = inlined_call_operand.vmem [shape: f32[1,16], index: 4, kind: input, shape index: {}]
  %s5 = inlined_call_operand.hbm [shape: f32[16,16], index: 5, kind: output, shape index: {0}]
  %s6 = inlined_call_operand.vmem [shape: f32[16,64], index: 6, kind: output, shape index: {1}]
  %7 = xla_tuple %s5, %s6
  %s8 = sld [smem:[#allocation0]]
  $region61: #{cam_forward.1} parent=0
    _
  %s10 = ssub.s32 1, %s8
  %s11 = scalar_select 0, %s10, %s8
  $region1: #{cam_forward.1} parent=0
    #allocation2 [shape = 'u8[8192]{0}', space=vmem, size = 0x2000, scoped, tag = 'output window, operand 0']
    #allocation3 [shape = 's32[2]{0}', space=sflag, size = 0x8, scoped, tag = 'scoped memory for cam_forward.1']
    %12 = vsyncpa [#allocation3], 0
    %s13 = scalar_lea.sflag [#allocation3], 1
    %14 = vsyncpa %s13, 0
    loop: start=0, step=1, limit=4
    $region2: #{cam_forward.1} parent=1 // loop_pre_header
      _
    $region3: #{cam_forward.1} parent=1 // loop_header
      %s16 = sphi 0, %s20
      %p17 = scmp.ge.s32.totalorder %s16, 4
      %s26 = sphi 0, %s28
      %s29 = sphi 0, %s26
      %s30 = sphi 0, %s29
      %s46 = sphi 0, %s30
      %s50 = sphi 0, %s50
      %s52 = sphi 0, %s50
      %s53 = sphi 0, %s52
      %s67 = sphi 0, %s53
      %s71 = sphi 0, %s71
      %s73 = sphi 0, %s71
      %s74 = sphi 0, %s73
      %s88 = sphi 0, %s74
      %s92 = sphi 0, %s92
      %s94 = sphi 0, %s92
      %s95 = sphi 0, %s94
      %s109 = sphi 0, %s95
      %s113 = sphi 0, %s113
      %s115 = sphi 0, %s113
      %s116 = sphi 0, %s115
      %s130 = sphi 0, %s116
      %s136 = sphi 0, %s138
      %s139 = sphi 0, %s136
      %s140 = sphi 0, %s139
      %s156 = sphi 0, %s140
      %s162 = sphi 0, %s164
      %s165 = sphi 0, %s162
      %s166 = sphi 0, %s165
      %s182 = sphi 0, %s166
    $region4: #{cam_forward.1} parent=1 // loop_header_branch
      %19 = sbr.rel (%p17) target = $region8
    $region5: #{cam_forward.1} parent=1 // loop_body
      %s21 = ssub.s32 %s16, 1
      %s22 = ssub.s32 %s16, 2
      %s23 = sadd.s32 %s16, 1
      %s24 = ssub.s32 %s16, %s23
      %p25 = scmp.eq.s32.totalorder %s24, 0
      %s27 = sadd.s32 %s26, 1
      %s28 = scalar_select %p25, %s26, %s27
      %p31 = pneg %p25
      %p32 = scmp.eq.s32.totalorder %s16, 1
      %p33 = por %p31, %p32
      %p34 = scmp.ne.s32.totalorder %s26, %s29
      %p35 = scmp.eq.s32.totalorder %s16, 0
      %p36 = por %p34, %p35
      %p37 = scmp.ne.s32.totalorder %s26, %s29
      %p38 = scmp.eq.s32.totalorder %s21, 1
      %p39 = por %p37, %p38
      %p40 = scmp.ne.s32.totalorder %s29, %s30
      %p41 = scmp.eq.s32.totalorder %s21, 0
      %p42 = por %p40, %p41
      %p43 = scmp.ne.s32.totalorder %s29, %s30
      %p44 = scmp.eq.s32.totalorder %s22, 1
      %p45 = por %p43, %p44
      %p47 = scmp.ne.s32.totalorder %s30, %s46
      %p48 = scmp.eq.s32.totalorder %s22, 0
      %p49 = por %p47, %p48
      %s51 = sadd.s32 %s50, 1
      %p54 = scmp.eq.s32.totalorder %s16, 1
      %p55 = scmp.ne.s32.totalorder %s50, %s52
      %p56 = scmp.eq.s32.totalorder %s16, 0
      %p57 = por %p55, %p56
      %p58 = scmp.ne.s32.totalorder %s50, %s52
      %p59 = scmp.eq.s32.totalorder %s21, 1
      %p60 = por %p58, %p59
      %p61 = scmp.ne.s32.totalorder %s52, %s53
      %p62 = scmp.eq.s32.totalorder %s21, 0
      %p63 = por %p61, %p62
      %p64 = scmp.ne.s32.totalorder %s52, %s53
      %p65 = scmp.eq.s32.totalorder %s22, 1
      %p66 = por %p64, %p65
      %p68 = scmp.ne.s32.totalorder %s53, %s67
      %p69 = scmp.eq.s32.totalorder %s22, 0
      %p70 = por %p68, %p69
      %s72 = sadd.s32 %s71, 1
      %p75 = scmp.eq.s32.totalorder %s16, 1
      %p76 = scmp.ne.s32.totalorder %s71, %s73
      %p77 = scmp.eq.s32.totalorder %s16, 0
      %p78 = por %p76, %p77
      %p79 = scmp.ne.s32.totalorder %s71, %s73
      %p80 = scmp.eq.s32.totalorder %s21, 1
      %p81 = por %p79, %p80
      %p82 = scmp.ne.s32.totalorder %s73, %s74
      %p83 = scmp.eq.s32.totalorder %s21, 0
      %p84 = por %p82, %p83
      %p85 = scmp.ne.s32.totalorder %s73, %s74
      %p86 = scmp.eq.s32.totalorder %s22, 1
      %p87 = por %p85, %p86
      %p89 = scmp.ne.s32.totalorder %s74, %s88
      %p90 = scmp.eq.s32.totalorder %s22, 0
      %p91 = por %p89, %p90
      %s93 = sadd.s32 %s92, 1
      %p96 = scmp.eq.s32.totalorder %s16, 1
      %p97 = scmp.ne.s32.totalorder %s92, %s94
      %p98 = scmp.eq.s32.totalorder %s16, 0
      %p99 = por %p97, %p98
      %p100 = scmp.ne.s32.totalorder %s92, %s94
      %p101 = scmp.eq.s32.totalorder %s21, 1
      %p102 = por %p100, %p101
      %p103 = scmp.ne.s32.totalorder %s94, %s95
      %p104 = scmp.eq.s32.totalorder %s21, 0
      %p105 = por %p103, %p104
      %p106 = scmp.ne.s32.totalorder %s94, %s95
      %p107 = scmp.eq.s32.totalorder %s22, 1
      %p108 = por %p106, %p107
      %p110 = scmp.ne.s32.totalorder %s95, %s109
      %p111 = scmp.eq.s32.totalorder %s22, 0
      %p112 = por %p110, %p111
      %s114 = sadd.s32 %s113, 1
      %p117 = scmp.eq.s32.totalorder %s16, 1
      %p118 = scmp.ne.s32.totalorder %s113, %s115
      %p119 = scmp.eq.s32.totalorder %s16, 0
      %p120 = por %p118, %p119
      %p121 = scmp.ne.s32.totalorder %s113, %s115
      %p122 = scmp.eq.s32.totalorder %s21, 1
      %p123 = por %p121, %p122
      %p124 = scmp.ne.s32.totalorder %s115, %s116
      %p125 = scmp.eq.s32.totalorder %s21, 0
      %p126 = por %p124, %p125
      %p127 = scmp.ne.s32.totalorder %s115, %s116
      %p128 = scmp.eq.s32.totalorder %s22, 1
      %p129 = por %p127, %p128
      %p131 = scmp.ne.s32.totalorder %s116, %s130
      %p132 = scmp.eq.s32.totalorder %s22, 0
      %p133 = por %p131, %p132
      %s134 = ssub.s32 %s16, %s23
      %p135 = scmp.eq.s32.totalorder %s134, 0
      %s137 = sadd.s32 %s136, 1
      %s138 = scalar_select %p135, %s136, %s137
      %p141 = pneg %p135
      %p142 = scmp.eq.s32.totalorder %s16, 1
      %p143 = por %p141, %p142
      %p144 = scmp.ne.s32.totalorder %s136, %s139
      %p145 = scmp.eq.s32.totalorder %s16, 0
      %p146 = por %p144, %p145
      %p147 = scmp.ne.s32.totalorder %s136, %s139
      %p148 = scmp.eq.s32.totalorder %s21, 1
      %p149 = por %p147, %p148
      %p150 = scmp.ne.s32.totalorder %s139, %s140
      %p151 = scmp.eq.s32.totalorder %s21, 0
      %p152 = por %p150, %p151
      %p153 = scmp.ne.s32.totalorder %s139, %s140
      %p154 = scmp.eq.s32.totalorder %s22, 1
      %p155 = por %p153, %p154
      %p157 = scmp.ne.s32.totalorder %s140, %s156
      %p158 = scmp.eq.s32.totalorder %s22, 0
      %p159 = por %p157, %p158
      %s160 = ssub.s32 %s16, %s23
      %p161 = scmp.eq.s32.totalorder %s160, 0
      %s163 = sadd.s32 %s162, 1
      %s164 = scalar_select %p161, %s162, %s163
      %p167 = pneg %p161
      %p168 = scmp.eq.s32.totalorder %s16, 1
      %p169 = por %p167, %p168
      %p170 = scmp.ne.s32.totalorder %s162, %s165
      %p171 = scmp.eq.s32.totalorder %s16, 0
      %p172 = por %p170, %p171
      %p173 = scmp.ne.s32.totalorder %s162, %s165
      %p174 = scmp.eq.s32.totalorder %s21, 1
      %p175 = por %p173, %p174
      %p176 = scmp.ne.s32.totalorder %s165, %s166
      %p177 = scmp.eq.s32.totalorder %s21, 0
      %p178 = por %p176, %p177
      %p179 = scmp.ne.s32.totalorder %s165, %s166
      %p180 = scmp.eq.s32.totalorder %s22, 1
      %p181 = por %p179, %p180
      %p183 = scmp.ne.s32.totalorder %s166, %s182
      %p184 = scmp.eq.s32.totalorder %s22, 0
      %p185 = por %p183, %p184
      %p186 = scmp.le.s32.totalorder 1, %s16
      %p187 = scmp.lt.s32.totalorder %s16, 3
      %p188 = pnand %p186, %p187
      %p189 = pneg %p188
      // Predicated region
      $region9: #{cam_forward.1} parent=5 // pred_check
        _
      $region10: #{cam_forward.1} parent=5 // pred_check_branch
        %191 = sbr.rel (%p188) target = $region12
      $region11: #{cam_forward.1} parent=5 // pred_region
        %s192 = ssub.s32 %s16, 1
        // Predicated region
        $region13: #{cam_forward.1} parent=11 // pred_check
          %p193 = pneg %p63
        $region14: #{cam_forward.1} parent=11 // pred_check_branch
          %195 = sbr.rel (%p193) target = $region16
        $region15: #{cam_forward.1} parent=11 // pred_region
          _
        $region16: #{cam_forward.1} parent=11 // pred_fallthru
          _
        // Predicated region
        $region17: #{cam_forward.1} parent=11 // pred_check
          %p196 = pneg %p84
        $region18: #{cam_forward.1} parent=11 // pred_check_branch
          %198 = sbr.rel (%p196) target = $region20
        $region19: #{cam_forward.1} parent=11 // pred_region
          _
        $region20: #{cam_forward.1} parent=11 // pred_fallthru
          _
        // Predicated region
        $region21: #{cam_forward.1} parent=11 // pred_check
          %p199 = pneg %p105
        $region22: #{cam_forward.1} parent=11 // pred_check_branch
          %201 = sbr.rel (%p199) target = $region24
        $region23: #{cam_forward.1} parent=11 // pred_region
          _
        $region24: #{cam_forward.1} parent=11 // pred_fallthru
          _
        // Predicated region
        $region25: #{cam_forward.1} parent=11 // pred_check
          %p202 = pneg %p126
        $region26: #{cam_forward.1} parent=11 // pred_check_branch
          %204 = sbr.rel (%p202) target = $region28
        $region27: #{cam_forward.1} parent=11 // pred_region
          _
        $region28: #{cam_forward.1} parent=11 // pred_fallthru
          _
      $region12: #{cam_forward.1} parent=5 // pred_fallthru
        _
      %p205 = scmp.lt.s32.totalorder %s16, 2
      // Predicated region
      $region29: #{cam_forward.1} parent=5 // pred_check
        %p206 = pneg %p205
      $region30: #{cam_forward.1} parent=5 // pred_check_branch
        %208 = sbr.rel (%p206) target = $region32
      $region31: #{cam_forward.1} parent=5 // pred_region
        // Predicated region
        $region33: #{cam_forward.1} parent=31 // pred_check
          %p209 = pneg %p36
        $region34: #{cam_forward.1} parent=31 // pred_check_branch
          %211 = sbr.rel (%p209) target = $region36
        $region35: #{cam_forward.1} parent=31 // pred_region
          %s212 = smul.u32 64, %s16
          %p213 = scmp.lt.s32.totalorder %s212, 127
          %s214 = scalar_select %p213, %s212, 127
          %s215 = smul.addr %s214, 4
          %s216 = scalar_lea.vmem %s0, %s215
          %s217 = smul.u32 64, %s16
        $region36: #{cam_forward.1} parent=31 // pred_fallthru
          _
      $region32: #{cam_forward.1} parent=5 // pred_fallthru
        _
      %p218 = scmp.le.s32.totalorder 1, %s16
      %p219 = scmp.lt.s32.totalorder %s16, 3
      %p220 = pnand %p218, %p219
      %p221 = pneg %p220
      // Predicated region
      $region37: #{cam_forward.1} parent=5 // pred_check
        _
      $region38: #{cam_forward.1} parent=5 // pred_check_branch
        %223 = sbr.rel (%p220) target = $region40
      $region39: #{cam_forward.1} parent=5 // pred_region
        %s224 = ssub.s32 %s16, 1
        %s225 = smul.u32 64, %s21
        %p226 = scmp.lt.s32.totalorder %s225, 127
        %s227 = scalar_select %p226, %s225, 127
        %s228 = smul.addr %s227, 4
        %s229 = scalar_lea.vmem %s0, %s228
        %p230 = pneg %p42
        %p231 = pneg %p39
        %p232 = pneg %p63
        %p233 = pneg %p60
        %p234 = pneg %p84
        %p235 = pneg %p81
        %p236 = pneg %p105
        %p237 = pneg %p102
        %p238 = pneg %p126
        %p239 = pneg %p123
        %p240 = pneg %p152
        %p241 = pneg %p149
        %s242 = sand.u32 %s139, 1
        %s243 = scalar_lea.sflag [#allocation3], %s242
        %s244 = sand.u32 %s139, 1
        %s245 = smul.addr %s244, 8
        %s246 = scalar_lea.vmem [#allocation2], %s245
        %p247 = pneg %p178
        %p248 = pneg %p175
        %p249 = scmp.lt.s32.totalorder %s21, 1
        %s250 = scalar_select %p249, %s21, 1
        %s251 = smul.addr %s250, 8
        %s252 = scalar_lea.vmem %s6, %s251
        %s253 = smul.u32 64, %s21
        %p254 = scmp.lt.s32.totalorder %s253, 127
        %s255 = scalar_select %p254, %s253, 127
        %s256 = smul.addr %s255, 4
        %s257 = scalar_lea.vmem %s0, %s256
        %s258 = smul.u32 64, %s21
        %p259 = scmp.lt.s32.totalorder %s21, 1
        %s260 = scalar_select %p259, %s21, 1
        %s261 = smul.addr %s260, 8
        %s262 = scalar_lea.vmem %s6, %s261
        %v263 = vld [vmem:[%s257] sm:$0xf]
        %v264 = vld [vmem:[%s257 + $0x4] sm:$0xf]
        %v265 = vld [vmem:[%s257 + $0x8] sm:$0xf]
        %v266 = vld [vmem:[%s257 + $0xc] sm:$0xf]
        %v267 = vld [vmem:[%s257 + $0x10] sm:$0xf]
        %v268 = vld [vmem:[%s257 + $0x14] sm:$0xf]
        %v269 = vld [vmem:[%s257 + $0x18] sm:$0xf]
        %v270 = vld [vmem:[%s257 + $0x1c] sm:$0xf]
        %v271 = vld [vmem:[%s257 + $0x20] sm:$0xf]
        %v272 = vld [vmem:[%s257 + $0x24] sm:$0xf]
        %v273 = vld [vmem:[%s257 + $0x28] sm:$0xf]
        %v274 = vld [vmem:[%s257 + $0x2c] sm:$0xf]
        %v275 = vld [vmem:[%s257 + $0x30] sm:$0xf]
        %v276 = vld [vmem:[%s257 + $0x34] sm:$0xf]
        %v277 = vld [vmem:[%s257 + $0x38] sm:$0xf]
        %v278 = vld [vmem:[%s257 + $0x3c] sm:$0xf]
        %v279 = vld [vmem:[%s257 + $0x40] sm:$0xf]
        %v280 = vld [vmem:[%s257 + $0x44] sm:$0xf]
        %v281 = vld [vmem:[%s257 + $0x48] sm:$0xf]
        %v282 = vld [vmem:[%s257 + $0x4c] sm:$0xf]
        %v283 = vld [vmem:[%s257 + $0x50] sm:$0xf]
        %v284 = vld [vmem:[%s257 + $0x54] sm:$0xf]
        %v285 = vld [vmem:[%s257 + $0x58] sm:$0xf]
        %v286 = vld [vmem:[%s257 + $0x5c] sm:$0xf]
        %v287 = vld [vmem:[%s257 + $0x60] sm:$0xf]
        %v288 = vld [vmem:[%s257 + $0x64] sm:$0xf]
        %v289 = vld [vmem:[%s257 + $0x68] sm:$0xf]
        %v290 = vld [vmem:[%s257 + $0x6c] sm:$0xf]
        %v291 = vld [vmem:[%s257 + $0x70] sm:$0xf]
        %v292 = vld [vmem:[%s257 + $0x74] sm:$0xf]
        %v293 = vld [vmem:[%s257 + $0x78] sm:$0xf]
        %v294 = vld [vmem:[%s257 + $0x7c] sm:$0xf]
        %v295 = vld [vmem:[%s257 + $0x80] sm:$0xf]
        %v296 = vld [vmem:[%s257 + $0x84] sm:$0xf]
        %v297 = vld [vmem:[%s257 + $0x88] sm:$0xf]
        %v298 = vld [vmem:[%s257 + $0x8c] sm:$0xf]
        %v299 = vld [vmem:[%s257 + $0x90] sm:$0xf]
        %v300 = vld [vmem:[%s257 + $0x94] sm:$0xf]
        %v301 = vld [vmem:[%s257 + $0x98] sm:$0xf]
        %v302 = vld [vmem:[%s257 + $0x9c] sm:$0xf]
        %v303 = vld [vmem:[%s257 + $0xa0] sm:$0xf]
        %v304 = vld [vmem:[%s257 + $0xa4] sm:$0xf]
        %v305 = vld [vmem:[%s257 + $0xa8] sm:$0xf]
        %v306 = vld [vmem:[%s257 + $0xac] sm:$0xf]
        %v307 = vld [vmem:[%s257 + $0xb0] sm:$0xf]
        %v308 = vld [vmem:[%s257 + $0xb4] sm:$0xf]
        %v309 = vld [vmem:[%s257 + $0xb8] sm:$0xf]
        %v310 = vld [vmem:[%s257 + $0xbc] sm:$0xf]
        %v311 = vld [vmem:[%s257 + $0xc0] sm:$0xf]
        %v312 = vld [vmem:[%s257 + $0xc4] sm:$0xf]
        %v313 = vld [vmem:[%s257 + $0xc8] sm:$0xf]
        %v314 = vld [vmem:[%s257 + $0xcc] sm:$0xf]
        %v315 = vld [vmem:[%s257 + $0xd0] sm:$0xf]
        %v316 = vld [vmem:[%s257 + $0xd4] sm:$0xf]
        %v317 = vld [vmem:[%s257 + $0xd8] sm:$0xf]
        %v318 = vld [vmem:[%s257 + $0xdc] sm:$0xf]
        %v319 = vld [vmem:[%s257 + $0xe0] sm:$0xf]
        %v320 = vld [vmem:[%s257 + $0xe4] sm:$0xf]
        %v321 = vld [vmem:[%s257 + $0xe8] sm:$0xf]
        %v322 = vld [vmem:[%s257 + $0xec] sm:$0xf]
        %v323 = vld [vmem:[%s257 + $0xf0] sm:$0xf]
        %v324 = vld [vmem:[%s257 + $0xf4] sm:$0xf]
        %v325 = vld [vmem:[%s257 + $0xf8] sm:$0xf]
        %v326 = vld [vmem:[%s257 + $0xfc] sm:$0xf]
        %v327 = vld [vmem:[%s1] sm:$0xf]
        %v328 = vld [vmem:[%s1 + $0x4] sm:$0xf]
        %v329 = vld [vmem:[%s1 + $0x8] sm:$0xf]
        %v330 = vld [vmem:[%s1 + $0xc] sm:$0xf]
        %v331 = vld [vmem:[%s1 + $0x10] sm:$0xf]
        %v332 = vld [vmem:[%s1 + $0x14] sm:$0xf]
        %v333 = vld [vmem:[%s1 + $0x18] sm:$0xf]
        %v334 = vld [vmem:[%s1 + $0x1c] sm:$0xf]
        %v335 = vld [vmem:[%s1 + $0x20] sm:$0xf]
        %v336 = vld [vmem:[%s1 + $0x24] sm:$0xf]
        %v337 = vld [vmem:[%s1 + $0x28] sm:$0xf]
        %v338 = vld [vmem:[%s1 + $0x2c] sm:$0xf]
        %v339 = vld [vmem:[%s1 + $0x30] sm:$0xf]
        %v340 = vld [vmem:[%s1 + $0x34] sm:$0xf]
        %v341 = vld [vmem:[%s1 + $0x38] sm:$0xf]
        %v342 = vld [vmem:[%s1 + $0x3c] sm:$0xf]
        %v343 = vld [vmem:[%s2] sm:$0x1]
        %v345 = vperm.slane %v343, 0
        %v411 = vunpack.c.l.b16 %v263
        %v412 = vunpack.c.l.b16 %v264
        %v413 = vunpack.c.l.b16 %v265
        %v414 = vunpack.c.l.b16 %v266
        %v415 = vunpack.c.l.b16 %v267
        %v416 = vunpack.c.l.b16 %v268
        %v417 = vunpack.c.l.b16 %v269
        %v418 = vunpack.c.l.b16 %v270
        %v419 = vunpack.c.l.b16 %v271
        %v420 = vunpack.c.l.b16 %v272
        %v421 = vunpack.c.l.b16 %v273
        %v422 = vunpack.c.l.b16 %v274
        %v423 = vunpack.c.l.b16 %v275
        %v424 = vunpack.c.l.b16 %v276
        %v425 = vunpack.c.l.b16 %v277
        %v426 = vunpack.c.l.b16 %v278
        %v427 = vunpack.c.l.b16 %v279
        %v428 = vunpack.c.l.b16 %v280
        %v429 = vunpack.c.l.b16 %v281
        %v430 = vunpack.c.l.b16 %v282
        %v431 = vunpack.c.l.b16 %v283
        %v432 = vunpack.c.l.b16 %v284
        %v433 = vunpack.c.l.b16 %v285
        %v434 = vunpack.c.l.b16 %v286
        %v435 = vunpack.c.l.b16 %v287
        %v436 = vunpack.c.l.b16 %v288
        %v437 = vunpack.c.l.b16 %v289
        %v438 = vunpack.c.l.b16 %v290
        %v439 = vunpack.c.l.b16 %v291
        %v440 = vunpack.c.l.b16 %v292
        %v441 = vunpack.c.l.b16 %v293
        %v442 = vunpack.c.l.b16 %v294
        %v443 = vunpack.c.l.b16 %v295
        %v444 = vunpack.c.l.b16 %v296
        %v445 = vunpack.c.l.b16 %v297
        %v446 = vunpack.c.l.b16 %v298
        %v447 = vunpack.c.l.b16 %v299
        %v448 = vunpack.c.l.b16 %v300
        %v449 = vunpack.c.l.b16 %v301
        %v450 = vunpack.c.l.b16 %v302
        %v451 = vunpack.c.l.b16 %v303
        %v452 = vunpack.c.l.b16 %v304
        %v453 = vunpack.c.l.b16 %v305
        %v454 = vunpack.c.l.b16 %v306
        %v455 = vunpack.c.l.b16 %v307
        %v456 = vunpack.c.l.b16 %v308
        %v457 = vunpack.c.l.b16 %v309
        %v458 = vunpack.c.l.b16 %v310
        %v459 = vunpack.c.l.b16 %v311
        %v460 = vunpack.c.l.b16 %v312
        %v461 = vunpack.c.l.b16 %v313
        %v462 = vunpack.c.l.b16 %v314
        %v463 = vunpack.c.l.b16 %v315
        %v464 = vunpack.c.l.b16 %v316
        %v465 = vunpack.c.l.b16 %v317
        %v466 = vunpack.c.l.b16 %v318
        %v467 = vunpack.c.l.b16 %v319
        %v468 = vunpack.c.l.b16 %v320
        %v469 = vunpack.c.l.b16 %v321
        %v470 = vunpack.c.l.b16 %v322
        %v471 = vunpack.c.l.b16 %v323
        %v472 = vunpack.c.l.b16 %v324
        %v473 = vunpack.c.l.b16 %v325
        %v474 = vunpack.c.l.b16 %v326
        %v475 = vpack.c.b16 %v412, %v411
        %v476 = vpack.c.b16 %v414, %v413
        %v477 = vpack.c.b16 %v416, %v415
        %v478 = vpack.c.b16 %v418, %v417
        %v479 = vpack.c.b16 %v420, %v419
        %v480 = vpack.c.b16 %v422, %v421
        %v481 = vpack.c.b16 %v424, %v423
        %v482 = vpack.c.b16 %v426, %v425
        %v483 = vpack.c.b16 %v428, %v427
        %v484 = vpack.c.b16 %v430, %v429
        %v485 = vpack.c.b16 %v432, %v431
        %v486 = vpack.c.b16 %v434, %v433
        %v487 = vpack.c.b16 %v436, %v435
        %v488 = vpack.c.b16 %v438, %v437
        %v489 = vpack.c.b16 %v440, %v439
        %v490 = vpack.c.b16 %v442, %v441
        %v491 = vpack.c.b16 %v444, %v443
        %v492 = vpack.c.b16 %v446, %v445
        %v493 = vpack.c.b16 %v448, %v447
        %v494 = vpack.c.b16 %v450, %v449
        %v495 = vpack.c.b16 %v452, %v451
        %v496 = vpack.c.b16 %v454, %v453
        %v497 = vpack.c.b16 %v456, %v455
        %v498 = vpack.c.b16 %v458, %v457
        %v499 = vpack.c.b16 %v460, %v459
        %v500 = vpack.c.b16 %v462, %v461
        %v501 = vpack.c.b16 %v464, %v463
        %v502 = vpack.c.b16 %v466, %v465
        %v503 = vpack.c.b16 %v468, %v467
        %v504 = vpack.c.b16 %v470, %v469
        %v505 = vpack.c.b16 %v472, %v471
        %v506 = vpack.c.b16 %v474, %v473
        %v555 = vunpack.c.l.b16 %v327
        %v556 = vunpack.c.l.b16 %v328
        %v557 = vunpack.c.l.b16 %v329
        %v558 = vunpack.c.l.b16 %v330
        %v559 = vunpack.c.l.b16 %v331
        %v560 = vunpack.c.l.b16 %v332
        %v561 = vunpack.c.l.b16 %v333
        %v562 = vunpack.c.l.b16 %v334
        %v563 = vunpack.c.l.b16 %v335
        %v564 = vunpack.c.l.b16 %v336
        %v565 = vunpack.c.l.b16 %v337
        %v566 = vunpack.c.l.b16 %v338
        %v567 = vunpack.c.l.b16 %v339
        %v568 = vunpack.c.l.b16 %v340
        %v569 = vunpack.c.l.b16 %v341
        %v570 = vunpack.c.l.b16 %v342
        %v571 = vpack.c.b16 %v556, %v555
        %v572 = vpack.c.b16 %v558, %v557
        %v573 = vpack.c.b16 %v560, %v559
        %v574 = vpack.c.b16 %v562, %v561
        %v575 = vpack.c.b16 %v564, %v563
        %v576 = vpack.c.b16 %v566, %v565
        %v577 = vpack.c.b16 %v568, %v567
        %v578 = vpack.c.b16 %v570, %v569
        %587 = vmatpush.bf16.msra.mxu0 %v578
        %588 = vmatpush.bf16.msra.mxu0 %v577
        %589 = vmatpush.bf16.msra.mxu0 %v576
        %590 = vmatpush.bf16.msra.mxu0 %v575
        %591 = vmatpush.bf16.msra.mxu0 %v574
        %592 = vmatpush.bf16.msra.mxu0 %v573
        %593 = vmatpush.bf16.msra.mxu0 %v572
        %594 = vmatpush.bf16.msra.mxu0 %v571
        %595 = vmatmul.bf16.gmra.mxu0 %v475
        %v596 = vpop.f32.mrf.mxu0
        %v597 = vadd.f32 %v345, %v596
        %v598 = vpop.f32.mrf.mxu0
        %v599 = vadd.f32 %v345, %v598
        %600 = vmatmul.bf16.gmra.mxu0 %v476
        %v601 = vpop.f32.mrf.mxu0
        %v602 = vadd.f32 %v345, %v601
        %v603 = vpop.f32.mrf.mxu0
        %v604 = vadd.f32 %v345, %v603
        %605 = vmatmul.bf16.gmra.mxu0 %v477
        %v606 = vpop.f32.mrf.mxu0
        %v607 = vadd.f32 %v345, %v606
        %v608 = vpop.f32.mrf.mxu0
        %v609 = vadd.f32 %v345, %v608
        %610 = vmatmul.bf16.gmra.mxu0 %v478
        %v611 = vpop.f32.mrf.mxu0
        %v612 = vadd.f32 %v345, %v611
        %v613 = vpop.f32.mrf.mxu0
        %v614 = vadd.f32 %v345, %v613
        %615 = vmatmul.bf16.gmra.mxu0 %v479
        %v616 = vpop.f32.mrf.mxu0
        %v617 = vadd.f32 %v345, %v616
        %v618 = vpop.f32.mrf.mxu0
        %v619 = vadd.f32 %v345, %v618
        %620 = vmatmul.bf16.gmra.mxu0 %v480
        %v621 = vpop.f32.mrf.mxu0
        %v622 = vadd.f32 %v345, %v621
        %v623 = vpop.f32.mrf.mxu0
        %v624 = vadd.f32 %v345, %v623
        %625 = vmatmul.bf16.gmra.mxu0 %v481
        %v626 = vpop.f32.mrf.mxu0
        %v627 = vadd.f32 %v345, %v626
        %v628 = vpop.f32.mrf.mxu0
        %v629 = vadd.f32 %v345, %v628
        %630 = vmatmul.bf16.gmra.mxu0 %v482
        %v631 = vpop.f32.mrf.mxu0
        %v632 = vadd.f32 %v345, %v631
        %v633 = vpop.f32.mrf.mxu0
        %v634 = vadd.f32 %v345, %v633
        %635 = vmatmul.bf16.gmra.mxu0 %v483
        %v636 = vpop.f32.mrf.mxu0
        %v637 = vadd.f32 %v345, %v636
        %v638 = vpop.f32.mrf.mxu0
        %v639 = vadd.f32 %v345, %v638
        %640 = vmatmul.bf16.gmra.mxu0 %v484
        %v641 = vpop.f32.mrf.mxu0
        %v642 = vadd.f32 %v345, %v641
        %v643 = vpop.f32.mrf.mxu0
        %v644 = vadd.f32 %v345, %v643
        %645 = vmatmul.bf16.gmra.mxu0 %v485
        %v646 = vpop.f32.mrf.mxu0
        %v647 = vadd.f32 %v345, %v646
        %v648 = vpop.f32.mrf.mxu0
        %v649 = vadd.f32 %v345, %v648
        %650 = vmatmul.bf16.gmra.mxu0 %v486
        %v651 = vpop.f32.mrf.mxu0
        %v652 = vadd.f32 %v345, %v651
        %v653 = vpop.f32.mrf.mxu0
        %v654 = vadd.f32 %v345, %v653
        %655 = vmatmul.bf16.gmra.mxu0 %v487
        %v656 = vpop.f32.mrf.mxu0
        %v657 = vadd.f32 %v345, %v656
        %v658 = vpop.f32.mrf.mxu0
        %v659 = vadd.f32 %v345, %v658
        %660 = vmatmul.bf16.gmra.mxu0 %v488
        %v661 = vpop.f32.mrf.mxu0
        %v662 = vadd.f32 %v345, %v661
        %v663 = vpop.f32.mrf.mxu0
        %v664 = vadd.f32 %v345, %v663
        %665 = vmatmul.bf16.gmra.mxu0 %v489
        %v666 = vpop.f32.mrf.mxu0
        %v667 = vadd.f32 %v345, %v666
        %v668 = vpop.f32.mrf.mxu0
        %v669 = vadd.f32 %v345, %v668
        %670 = vmatmul.bf16.gmra.mxu0 %v490
        %v671 = vpop.f32.mrf.mxu0
        %v672 = vadd.f32 %v345, %v671
        %v673 = vpop.f32.mrf.mxu0
        %v674 = vadd.f32 %v345, %v673
        %675 = vmatmul.bf16.gmra.mxu0 %v491
        %v676 = vpop.f32.mrf.mxu0
        %v677 = vadd.f32 %v345, %v676
        %v678 = vpop.f32.mrf.mxu0
        %v679 = vadd.f32 %v345, %v678
        %680 = vmatmul.bf16.gmra.mxu0 %v492
        %v681 = vpop.f32.mrf.mxu0
        %v682 = vadd.f32 %v345, %v681
        %v683 = vpop.f32.mrf.mxu0
        %v684 = vadd.f32 %v345, %v683
        %685 = vmatmul.bf16.gmra.mxu0 %v493
        %v686 = vpop.f32.mrf.mxu0
        %v687 = vadd.f32 %v345, %v686
        %v688 = vpop.f32.mrf.mxu0
        %v689 = vadd.f32 %v345, %v688
        %690 = vmatmul.bf16.gmra.mxu0 %v494
        %v691 = vpop.f32.mrf.mxu0
        %v692 = vadd.f32 %v345, %v691
        %v693 = vpop.f32.mrf.mxu0
        %v694 = vadd.f32 %v345, %v693
        %695 = vmatmul.bf16.gmra.mxu0 %v495
        %v696 = vpop.f32.mrf.mxu0
        %v697 = vadd.f32 %v345, %v696
        %v698 = vpop.f32.mrf.mxu0
        %v699 = vadd.f32 %v345, %v698
        %700 = vmatmul.bf16.gmra.mxu0 %v496
        %v701 = vpop.f32.mrf.mxu0
        %v702 = vadd.f32 %v345, %v701
        %v703 = vpop.f32.mrf.mxu0
        %v704 = vadd.f32 %v345, %v703
        %705 = vmatmul.bf16.gmra.mxu0 %v497
        %v706 = vpop.f32.mrf.mxu0
        %v707 = vadd.f32 %v345, %v706
        %v708 = vpop.f32.mrf.mxu0
        %v709 = vadd.f32 %v345, %v708
        %710 = vmatmul.bf16.gmra.mxu0 %v498
        %v711 = vpop.f32.mrf.mxu0
        %v712 = vadd.f32 %v345, %v711
        %v713 = vpop.f32.mrf.mxu0
        %v714 = vadd.f32 %v345, %v713
        %715 = vmatmul.bf16.gmra.mxu0 %v499
        %v716 = vpop.f32.mrf.mxu0
        %v717 = vadd.f32 %v345, %v716
        %v718 = vpop.f32.mrf.mxu0
        %v719 = vadd.f32 %v345, %v718
        %720 = vmatmul.bf16.gmra.mxu0 %v500
        %v721 = vpop.f32.mrf.mxu0
        %v722 = vadd.f32 %v345, %v721
        %v723 = vpop.f32.mrf.mxu0
        %v724 = vadd.f32 %v345, %v723
        %725 = vmatmul.bf16.gmra.mxu0 %v501
        %v726 = vpop.f32.mrf.mxu0
        %v727 = vadd.f32 %v345, %v726
        %v728 = vpop.f32.mrf.mxu0
        %v729 = vadd.f32 %v345, %v728
        %730 = vmatmul.bf16.gmra.mxu0 %v502
        %v731 = vpop.f32.mrf.mxu0
        %v732 = vadd.f32 %v345, %v731
        %v733 = vpop.f32.mrf.mxu0
        %v734 = vadd.f32 %v345, %v733
        %735 = vmatmul.bf16.gmra.mxu0 %v503
        %v736 = vpop.f32.mrf.mxu0
        %v737 = vadd.f32 %v345, %v736
        %v738 = vpop.f32.mrf.mxu0
        %v739 = vadd.f32 %v345, %v738
        %740 = vmatmul.bf16.gmra.mxu0 %v504
        %v741 = vpop.f32.mrf.mxu0
        %v742 = vadd.f32 %v345, %v741
        %v743 = vpop.f32.mrf.mxu0
        %v744 = vadd.f32 %v345, %v743
        %745 = vmatmul.bf16.gmra.mxu0 %v505
        %v746 = vpop.f32.mrf.mxu0
        %v747 = vadd.f32 %v345, %v746
        %v748 = vpop.f32.mrf.mxu0
        %v749 = vadd.f32 %v345, %v748
        %750 = vmatmul.bf16.gmra.mxu0 %v506
        %v751 = vpop.f32.mrf.mxu0
        %v752 = vadd.f32 %v345, %v751
        %v753 = vpop.f32.mrf.mxu0
        %v754 = vadd.f32 %v345, %v753
        %755 = vdwg.mxu0
        %v756 = vmax.f32 %v597, 0.0
        %v757 = vmax.f32 %v599, 0.0
        %v758 = vmax.f32 %v602, 0.0
        %v759 = vmax.f32 %v604, 0.0
        %v760 = vmax.f32 %v607, 0.0
        %v761 = vmax.f32 %v609, 0.0
        %v762 = vmax.f32 %v612, 0.0
        %v763 = vmax.f32 %v614, 0.0
        %v764 = vmax.f32 %v617, 0.0
        %v765 = vmax.f32 %v619, 0.0
        %v766 = vmax.f32 %v622, 0.0
        %v767 = vmax.f32 %v624, 0.0
        %v768 = vmax.f32 %v627, 0.0
        %v769 = vmax.f32 %v629, 0.0
        %v770 = vmax.f32 %v632, 0.0
        %v771 = vmax.f32 %v634, 0.0
        %v772 = vmax.f32 %v637, 0.0
        %v773 = vmax.f32 %v639, 0.0
        %v774 = vmax.f32 %v642, 0.0
        %v775 = vmax.f32 %v644, 0.0
        %v776 = vmax.f32 %v647, 0.0
        %v777 = vmax.f32 %v649, 0.0
        %v778 = vmax.f32 %v652, 0.0
        %v779 = vmax.f32 %v654, 0.0
        %v780 = vmax.f32 %v657, 0.0
        %v781 = vmax.f32 %v659, 0.0
        %v782 = vmax.f32 %v662, 0.0
        %v783 = vmax.f32 %v664, 0.0
        %v784 = vmax.f32 %v667, 0.0
        %v785 = vmax.f32 %v669, 0.0
        %v786 = vmax.f32 %v672, 0.0
        %v787 = vmax.f32 %v674, 0.0
        %v788 = vmax.f32 %v677, 0.0
        %v789 = vmax.f32 %v679, 0.0
        %v790 = vmax.f32 %v682, 0.0
        %v791 = vmax.f32 %v684, 0.0
        %v792 = vmax.f32 %v687, 0.0
        %v793 = vmax.f32 %v689, 0.0
        %v794 = vmax.f32 %v692, 0.0
        %v795 = vmax.f32 %v694, 0.0
        %v796 = vmax.f32 %v697, 0.0
        %v797 = vmax.f32 %v699, 0.0
        %v798 = vmax.f32 %v702, 0.0
        %v799 = vmax.f32 %v704, 0.0
        %v800 = vmax.f32 %v707, 0.0
        %v801 = vmax.f32 %v709, 0.0
        %v802 = vmax.f32 %v712, 0.0
        %v803 = vmax.f32 %v714, 0.0
        %v804 = vmax.f32 %v717, 0.0
        %v805 = vmax.f32 %v719, 0.0
        %v806 = vmax.f32 %v722, 0.0
        %v807 = vmax.f32 %v724, 0.0
        %v808 = vmax.f32 %v727, 0.0
        %v809 = vmax.f32 %v729, 0.0
        %v810 = vmax.f32 %v732, 0.0
        %v811 = vmax.f32 %v734, 0.0
        %v812 = vmax.f32 %v737, 0.0
        %v813 = vmax.f32 %v739, 0.0
        %v814 = vmax.f32 %v742, 0.0
        %v815 = vmax.f32 %v744, 0.0
        %v816 = vmax.f32 %v747, 0.0
        %v817 = vmax.f32 %v749, 0.0
        %v818 = vmax.f32 %v752, 0.0
        %v819 = vmax.f32 %v754, 0.0
        %v820 = vadd.f32 %v756, %v757
        %v821 = vadd.f32 %v820, %v758
        %v822 = vadd.f32 %v821, %v759
        %v823 = vadd.f32 %v822, %v760
        %v824 = vadd.f32 %v823, %v761
        %v825 = vadd.f32 %v824, %v762
        %v826 = vadd.f32 %v825, %v763
        %v827 = vrot.slane %v826, 4
        %v828 = vadd.f32 %v826, %v827
        %v829 = vrot.slane %v828, 2
        %v830 = vadd.f32 %v828, %v829
        %v831 = vrot.slane %v830, 1
        %v832 = vadd.f32 %v830, %v831
        %v833 = vadd.f32 %v764, %v765
        %v834 = vadd.f32 %v833, %v766
        %v835 = vadd.f32 %v834, %v767
        %v836 = vadd.f32 %v835, %v768
        %v837 = vadd.f32 %v836, %v769
        %v838 = vadd.f32 %v837, %v770
        %v839 = vadd.f32 %v838, %v771
        %v840 = vrot.slane %v839, 4
        %v841 = vadd.f32 %v839, %v840
        %v842 = vrot.slane %v841, 2
        %v843 = vadd.f32 %v841, %v842
        %v844 = vrot.slane %v843, 1
        %v845 = vadd.f32 %v843, %v844
        %v846 = vadd.f32 %v772, %v773
        %v847 = vadd.f32 %v846, %v774
        %v848 = vadd.f32 %v847, %v775
        %v849 = vadd.f32 %v848, %v776
        %v850 = vadd.f32 %v849, %v777
        %v851 = vadd.f32 %v850, %v778
        %v852 = vadd.f32 %v851, %v779
        %v853 = vrot.slane %v852, 4
        %v854 = vadd.f32 %v852, %v853
        %v855 = vrot.slane %v854, 2
        %v856 = vadd.f32 %v854, %v855
        %v857 = vrot.slane %v856, 1
        %v858 = vadd.f32 %v856, %v857
        %v859 = vadd.f32 %v780, %v781
        %v860 = vadd.f32 %v859, %v782
        %v861 = vadd.f32 %v860, %v783
        %v862 = vadd.f32 %v861, %v784
        %v863 = vadd.f32 %v862, %v785
        %v864 = vadd.f32 %v863, %v786
        %v865 = vadd.f32 %v864, %v787
        %v866 = vrot.slane %v865, 4
        %v867 = vadd.f32 %v865, %v866
        %v868 = vrot.slane %v867, 2
        %v869 = vadd.f32 %v867, %v868
        %v870 = vrot.slane %v869, 1
        %v871 = vadd.f32 %v869, %v870
        %v872 = vadd.f32 %v788, %v789
        %v873 = vadd.f32 %v872, %v790
        %v874 = vadd.f32 %v873, %v791
        %v875 = vadd.f32 %v874, %v792
        %v876 = vadd.f32 %v875, %v793
        %v877 = vadd.f32 %v876, %v794
        %v878 = vadd.f32 %v877, %v795
        %v879 = vrot.slane %v878, 4
        %v880 = vadd.f32 %v878, %v879
        %v881 = vrot.slane %v880, 2
        %v882 = vadd.f32 %v880, %v881
        %v883 = vrot.slane %v882, 1
        %v884 = vadd.f32 %v882, %v883
        %v885 = vadd.f32 %v796, %v797
        %v886 = vadd.f32 %v885, %v798
        %v887 = vadd.f32 %v886, %v799
        %v888 = vadd.f32 %v887, %v800
        %v889 = vadd.f32 %v888, %v801
        %v890 = vadd.f32 %v889, %v802
        %v891 = vadd.f32 %v890, %v803
        %v892 = vrot.slane %v891, 4
        %v893 = vadd.f32 %v891, %v892
        %v894 = vrot.slane %v893, 2
        %v895 = vadd.f32 %v893, %v894
        %v896 = vrot.slane %v895, 1
        %v897 = vadd.f32 %v895, %v896
        %v898 = vadd.f32 %v804, %v805
        %v899 = vadd.f32 %v898, %v806
        %v900 = vadd.f32 %v899, %v807
        %v901 = vadd.f32 %v900, %v808
        %v902 = vadd.f32 %v901, %v809
        %v903 = vadd.f32 %v902, %v810
        %v904 = vadd.f32 %v903, %v811
        %v905 = vrot.slane %v904, 4
        %v906 = vadd.f32 %v904, %v905
        %v907 = vrot.slane %v906, 2
        %v908 = vadd.f32 %v906, %v907
        %v909 = vrot.slane %v908, 1
        %v910 = vadd.f32 %v908, %v909
        %v911 = vadd.f32 %v812, %v813
        %v912 = vadd.f32 %v911, %v814
        %v913 = vadd.f32 %v912, %v815
        %v914 = vadd.f32 %v913, %v816
        %v915 = vadd.f32 %v914, %v817
        %v916 = vadd.f32 %v915, %v818
        %v917 = vadd.f32 %v916, %v819
        %v918 = vrot.slane %v917, 4
        %v919 = vadd.f32 %v917, %v918
        %v920 = vrot.slane %v919, 2
        %v921 = vadd.f32 %v919, %v920
        %v922 = vrot.slane %v921, 1
        %v923 = vadd.f32 %v921, %v922
        %v924 = vrcp.pop 64.0
        %v925 = vmul.f32 64.0, %v924
        %v926 = vsub.f32 1.0, %v925
        %v927 = vmul.f32 %v924, %v926
        %v928 = vadd.f32 %v924, %v927
        %vm929 = vweird.f32 %v924
        %v930 = vsel %vm929, %v924, %v928
        %v931 = vmul.f32 %v832, %v930
        %v932 = vmul.f32 %v845, %v930
        %v933 = vmul.f32 %v858, %v930
        %v934 = vmul.f32 %v871, %v930
        %v935 = vmul.f32 %v884, %v930
        %v936 = vmul.f32 %v897, %v930
        %v937 = vmul.f32 %v910, %v930
        %v938 = vmul.f32 %v923, %v930
        %v939 = vld [vmem:[%s3] sm:$0xf]
        %v940 = vld [vmem:[%s3 + $0x4] sm:$0xf]
        %v941 = vld [vmem:[%s3 + $0x8] sm:$0xf]
        %v942 = vld [vmem:[%s3 + $0xc] sm:$0xf]
        %v943 = vld [vmem:[%s3 + $0x10] sm:$0xf]
        %v944 = vld [vmem:[%s3 + $0x14] sm:$0xf]
        %v945 = vld [vmem:[%s3 + $0x18] sm:$0xf]
        %v946 = vld [vmem:[%s3 + $0x1c] sm:$0xf]
        %v947 = vld [vmem:[%s3 + $0x20] sm:$0xf]
        %v948 = vld [vmem:[%s3 + $0x24] sm:$0xf]
        %v949 = vld [vmem:[%s3 + $0x28] sm:$0xf]
        %v950 = vld [vmem:[%s3 + $0x2c] sm:$0xf]
        %v951 = vld [vmem:[%s3 + $0x30] sm:$0xf]
        %v952 = vld [vmem:[%s3 + $0x34] sm:$0xf]
        %v953 = vld [vmem:[%s3 + $0x38] sm:$0xf]
        %v954 = vld [vmem:[%s3 + $0x3c] sm:$0xf]
        %v955 = vunpack.c.l.bf16 %v939
        %v956 = vunpack.c.l.bf16 %v940
        %v957 = vunpack.c.l.bf16 %v941
        %v958 = vunpack.c.l.bf16 %v942
        %v959 = vunpack.c.l.bf16 %v943
        %v960 = vunpack.c.l.bf16 %v944
        %v961 = vunpack.c.l.bf16 %v945
        %v962 = vunpack.c.l.bf16 %v946
        %v963 = vunpack.c.l.bf16 %v947
        %v964 = vunpack.c.l.bf16 %v948
        %v965 = vunpack.c.l.bf16 %v949
        %v966 = vunpack.c.l.bf16 %v950
        %v967 = vunpack.c.l.bf16 %v951
        %v968 = vunpack.c.l.bf16 %v952
        %v969 = vunpack.c.l.bf16 %v953
        %v970 = vunpack.c.l.bf16 %v954
        %v971 = vld [vmem:[%s4] sm:$0x1]
        %v973 = vperm.slane %v971, 0
        %vm983 = vcmask 1041409
        %v984 = vsel %vm983, %v932, %v931
        %vm985 = vcmask 1042434
        %v986 = vsel %vm985, %v933, %v984
        %vm987 = vcmask 1043459
        %v988 = vsel %vm987, %v934, %v986
        %vm989 = vcmask 1044484
        %v990 = vsel %vm989, %v935, %v988
        %vm991 = vcmask 1045509
        %v992 = vsel %vm991, %v936, %v990
        %vm993 = vcmask 1046534
        %v994 = vsel %vm993, %v937, %v992
        %vm995 = vcmask 1047559
        %v996 = vsel %vm995, %v938, %v994
        %998 = vmatpush.msra.mxu0 %v970
        %999 = vmatpush.msra.mxu0 %v969
        %1000 = vmatpush.msra.mxu0 %v968
        %1001 = vmatpush.msra.mxu0 %v967
        %1002 = vmatpush.msra.mxu0 %v966
        %1003 = vmatpush.msra.mxu0 %v965
        %1004 = vmatpush.msra.mxu0 %v964
        %1005 = vmatpush.msra.mxu0 %v963
        %1006 = vmatpush.msra.mxu0 %v962
        %1007 = vmatpush.msra.mxu0 %v961
        %1008 = vmatpush.msra.mxu0 %v960
        %1009 = vmatpush.msra.mxu0 %v959
        %1010 = vmatpush.msra.mxu0 %v958
        %1011 = vmatpush.msra.mxu0 %v957
        %1012 = vmatpush.msra.mxu0 %v956
        %1013 = vmatpush.msra.mxu0 %v955
        %1014 = vmatmul.f32.gmra.mxu0 %v996
        %v1015 = vpop.f32.mrf.mxu0
        %v1016 = vadd.f32 %v973, %v1015
        %1017 = vdwg.mxu0
        %vm1018 = vcmask 130048
        %1019 = vst.msk [vmem:[%s246] sm:$0xff] %vm1018, %v1016
        %v1020 = vlaneseq
        %v1021 = vand.u32 %v1020, 127
        %v1022 = vsel %vm1018, %v1016, -inf
        %1023 = vmax.xlane.f32.xlu0 %v1022
        %v1024 = vpop.xlane.xlu0 %1023
        %vm1025 = vcmp.eq.f32.partialorder %v1016, %v1024
        %v1026 = vsel %vm1025, %v1021, 16
        %v1027 = vsel %vm1018, %v1026, 2147483647
        %v1028 = vand.u32 %v1027, 65535
        %v1029 = vshra.s32 %v1027, 16
        %v1030 = vcvt.s32.f32 %v1028
        %v1031 = vcvt.s32.f32 %v1029
        %1032 = vmin.xlane.f32.xlu0 %v1031
        %v1033 = vpop.xlane.xlu0 %1032
        %vm1034 = vcmp.eq.f32.partialorder %v1031, %v1033
        %v1035 = vsel %vm1034, %v1030, inf
        %1036 = vmin.xlane.f32.xlu0 %v1035
        %v1037 = vpop.xlane.xlu0 %1036
        %v1038 = vcvt.f32.s32 %v1037
        %v1039 = vcvt.f32.s32 %v1033
        %v1040 = vshll.u32 %v1039, 16
        %v1041 = vadd.s32 %v1040, %v1038
        %vm1042 = vcmp.eq.s32.totalorder %v1021, %v1041
        %v1043 = vsel %vm1042, 1, 0
        %v1044 = vcvt.s32.f32 %v1043
        %v1046 = vsel %vm1018, %v1044, 0
        %v1049 = vsel %vm1018, %v955, 0
        %v1052 = vsel %vm1018, %v956, 0
        %v1055 = vsel %vm1018, %v957, 0
        %v1058 = vsel %vm1018, %v958, 0
        %v1061 = vsel %vm1018, %v959, 0
        %v1064 = vsel %vm1018, %v960, 0
        %v1067 = vsel %vm1018, %v961, 0
        %v1070 = vsel %vm1018, %v962, 0
        %v1073 = vsel %vm1018, %v963, 0
        %v1076 = vsel %vm1018, %v964, 0
        %v1079 = vsel %vm1018, %v965, 0
        %v1082 = vsel %vm1018, %v966, 0
        %v1085 = vsel %vm1018, %v967, 0
        %v1088 = vsel %vm1018, %v968, 0
        %v1091 = vsel %vm1018, %v969, 0
        %v1094 = vsel %vm1018, %v970, 0
        %1096 = vmatpush.xpose.msra.mxu0 %v1094
        %1097 = vmatpush.xpose.msra.mxu0 %v1091
        %1098 = vmatpush.xpose.msra.mxu0 %v1088
        %1099 = vmatpush.xpose.msra.mxu0 %v1085
        %1100 = vmatpush.xpose.msra.mxu0 %v1082
        %1101 = vmatpush.xpose.msra.mxu0 %v1079
        %1102 = vmatpush.xpose.msra.mxu0 %v1076
        %1103 = vmatpush.xpose.msra.mxu0 %v1073
        %1104 = vmatpush.xpose.msra.mxu0 %v1070
        %1105 = vmatpush.xpose.msra.mxu0 %v1067
        %1106 = vmatpush.xpose.msra.mxu0 %v1064
        %1107 = vmatpush.xpose.msra.mxu0 %v1061
        %1108 = vmatpush.xpose.msra.mxu0 %v1058
        %1109 = vmatpush.xpose.msra.mxu0 %v1055
        %1110 = vmatpush.xpose.msra.mxu0 %v1052
        %1111 = vmatpush.xpose.msra.mxu0 %v1049
        %1112 = vmatmul.f32.gmra.mxu0 %v1046
        %v1113 = vpop.f32.mrf.mxu0
        %v1114 = vadd.f32 0.0, %v1113
        %1115 = vdwg.mxu0
        %v1117 = vrot.slane %v1114, 1
        %v1118 = vrot.slane %v1114, 2
        %v1119 = vrot.slane %v1114, 3
        %v1120 = vrot.slane %v1114, 4
        %v1121 = vrot.slane %v1114, 5
        %v1122 = vrot.slane %v1114, 6
        %v1123 = vrot.slane %v1114, 7
        %v1124 = vperm.slane %v1114, 0
        %v1125 = vperm.slane %v1117, 0
        %v1126 = vperm.slane %v1118, 0
        %v1127 = vperm.slane %v1119, 0
        %v1128 = vperm.slane %v1120, 0
        %v1129 = vperm.slane %v1121, 0
        %v1130 = vperm.slane %v1122, 0
        %v1131 = vperm.slane %v1123, 0
        %v1140 = vmul.f32 %v756, %v1124
        %v1141 = vmul.f32 %v757, %v1124
        %v1142 = vmul.f32 %v758, %v1124
        %v1143 = vmul.f32 %v759, %v1124
        %v1144 = vmul.f32 %v760, %v1124
        %v1145 = vmul.f32 %v761, %v1124
        %v1146 = vmul.f32 %v762, %v1124
        %v1147 = vmul.f32 %v763, %v1124
        %v1148 = vmul.f32 %v764, %v1125
        %v1149 = vmul.f32 %v765, %v1125
        %v1150 = vmul.f32 %v766, %v1125
        %v1151 = vmul.f32 %v767, %v1125
        %v1152 = vmul.f32 %v768, %v1125
        %v1153 = vmul.f32 %v769, %v1125
        %v1154 = vmul.f32 %v770, %v1125
        %v1155 = vmul.f32 %v771, %v1125
        %v1156 = vmul.f32 %v772, %v1126
        %v1157 = vmul.f32 %v773, %v1126
        %v1158 = vmul.f32 %v774, %v1126
        %v1159 = vmul.f32 %v775, %v1126
        %v1160 = vmul.f32 %v776, %v1126
        %v1161 = vmul.f32 %v777, %v1126
        %v1162 = vmul.f32 %v778, %v1126
        %v1163 = vmul.f32 %v779, %v1126
        %v1164 = vmul.f32 %v780, %v1127
        %v1165 = vmul.f32 %v781, %v1127
        %v1166 = vmul.f32 %v782, %v1127
        %v1167 = vmul.f32 %v783, %v1127
        %v1168 = vmul.f32 %v784, %v1127
        %v1169 = vmul.f32 %v785, %v1127
        %v1170 = vmul.f32 %v786, %v1127
        %v1171 = vmul.f32 %v787, %v1127
        %v1172 = vmul.f32 %v788, %v1128
        %v1173 = vmul.f32 %v789, %v1128
        %v1174 = vmul.f32 %v790, %v1128
        %v1175 = vmul.f32 %v791, %v1128
        %v1176 = vmul.f32 %v792, %v1128
        %v1177 = vmul.f32 %v793, %v1128
        %v1178 = vmul.f32 %v794, %v1128
        %v1179 = vmul.f32 %v795, %v1128
        %v1180 = vmul.f32 %v796, %v1129
        %v1181 = vmul.f32 %v797, %v1129
        %v1182 = vmul.f32 %v798, %v1129
        %v1183 = vmul.f32 %v799, %v1129
        %v1184 = vmul.f32 %v800, %v1129
        %v1185 = vmul.f32 %v801, %v1129
        %v1186 = vmul.f32 %v802, %v1129
        %v1187 = vmul.f32 %v803, %v1129
        %v1188 = vmul.f32 %v804, %v1130
        %v1189 = vmul.f32 %v805, %v1130
        %v1190 = vmul.f32 %v806, %v1130
        %v1191 = vmul.f32 %v807, %v1130
        %v1192 = vmul.f32 %v808, %v1130
        %v1193 = vmul.f32 %v809, %v1130
        %v1194 = vmul.f32 %v810, %v1130
        %v1195 = vmul.f32 %v811, %v1130
        %v1196 = vmul.f32 %v812, %v1131
        %v1197 = vmul.f32 %v813, %v1131
        %v1198 = vmul.f32 %v814, %v1131
        %v1199 = vmul.f32 %v815, %v1131
        %v1200 = vmul.f32 %v816, %v1131
        %v1201 = vmul.f32 %v817, %v1131
        %v1202 = vmul.f32 %v818, %v1131
        %v1203 = vmul.f32 %v819, %v1131
        %1204 = vadd.xlane.f32.xlu0 %v1140
        %v1205 = vpop.xlane.xlu0 %1204
        %1206 = vadd.xlane.f32.xlu0 %v1141
        %v1207 = vpop.xlane.xlu0 %1206
        %1208 = vadd.xlane.f32.xlu0 %v1142
        %v1209 = vpop.xlane.xlu0 %1208
        %1210 = vadd.xlane.f32.xlu0 %v1143
        %v1211 = vpop.xlane.xlu0 %1210
        %1212 = vadd.xlane.f32.xlu0 %v1144
        %v1213 = vpop.xlane.xlu0 %1212
        %1214 = vadd.xlane.f32.xlu0 %v1145
        %v1215 = vpop.xlane.xlu0 %1214
        %1216 = vadd.xlane.f32.xlu0 %v1146
        %v1217 = vpop.xlane.xlu0 %1216
        %1218 = vadd.xlane.f32.xlu0 %v1147
        %v1219 = vpop.xlane.xlu0 %1218
        %1220 = vadd.xlane.f32.xlu0 %v1148
        %v1221 = vpop.xlane.xlu0 %1220
        %1222 = vadd.xlane.f32.xlu0 %v1149
        %v1223 = vpop.xlane.xlu0 %1222
        %1224 = vadd.xlane.f32.xlu0 %v1150
        %v1225 = vpop.xlane.xlu0 %1224
        %1226 = vadd.xlane.f32.xlu0 %v1151
        %v1227 = vpop.xlane.xlu0 %1226
        %1228 = vadd.xlane.f32.xlu0 %v1152
        %v1229 = vpop.xlane.xlu0 %1228
        %1230 = vadd.xlane.f32.xlu0 %v1153
        %v1231 = vpop.xlane.xlu0 %1230
        %1232 = vadd.xlane.f32.xlu0 %v1154
        %v1233 = vpop.xlane.xlu0 %1232
        %1234 = vadd.xlane.f32.xlu0 %v1155
        %v1235 = vpop.xlane.xlu0 %1234
        %1236 = vadd.xlane.f32.xlu0 %v1156
        %v1237 = vpop.xlane.xlu0 %1236
        %1238 = vadd.xlane.f32.xlu0 %v1157
        %v1239 = vpop.xlane.xlu0 %1238
        %1240 = vadd.xlane.f32.xlu0 %v1158
        %v1241 = vpop.xlane.xlu0 %1240
        %1242 = vadd.xlane.f32.xlu0 %v1159
        %v1243 = vpop.xlane.xlu0 %1242
        %1244 = vadd.xlane.f32.xlu0 %v1160
        %v1245 = vpop.xlane.xlu0 %1244
        %1246 = vadd.xlane.f32.xlu0 %v1161
        %v1247 = vpop.xlane.xlu0 %1246
        %1248 = vadd.xlane.f32.xlu0 %v1162
        %v1249 = vpop.xlane.xlu0 %1248
        %1250 = vadd.xlane.f32.xlu0 %v1163
        %v1251 = vpop.xlane.xlu0 %1250
        %1252 = vadd.xlane.f32.xlu0 %v1164
        %v1253 = vpop.xlane.xlu0 %1252
        %1254 = vadd.xlane.f32.xlu0 %v1165
        %v1255 = vpop.xlane.xlu0 %1254
        %1256 = vadd.xlane.f32.xlu0 %v1166
        %v1257 = vpop.xlane.xlu0 %1256
        %1258 = vadd.xlane.f32.xlu0 %v1167
        %v1259 = vpop.xlane.xlu0 %1258
        %1260 = vadd.xlane.f32.xlu0 %v1168
        %v1261 = vpop.xlane.xlu0 %1260
        %1262 = vadd.xlane.f32.xlu0 %v1169
        %v1263 = vpop.xlane.xlu0 %1262
        %1264 = vadd.xlane.f32.xlu0 %v1170
        %v1265 = vpop.xlane.xlu0 %1264
        %1266 = vadd.xlane.f32.xlu0 %v1171
        %v1267 = vpop.xlane.xlu0 %1266
        %1268 = vadd.xlane.f32.xlu0 %v1172
        %v1269 = vpop.xlane.xlu0 %1268
        %1270 = vadd.xlane.f32.xlu0 %v1173
        %v1271 = vpop.xlane.xlu0 %1270
        %1272 = vadd.xlane.f32.xlu0 %v1174
        %v1273 = vpop.xlane.xlu0 %1272
        %1274 = vadd.xlane.f32.xlu0 %v1175
        %v1275 = vpop.xlane.xlu0 %1274
        %1276 = vadd.xlane.f32.xlu0 %v1176
        %v1277 = vpop.xlane.xlu0 %1276
        %1278 = vadd.xlane.f32.xlu0 %v1177
        %v1279 = vpop.xlane.xlu0 %1278
        %1280 = vadd.xlane.f32.xlu0 %v1178
        %v1281 = vpop.xlane.xlu0 %1280
        %1282 = vadd.xlane.f32.xlu0 %v1179
        %v1283 = vpop.xlane.xlu0 %1282
        %1284 = vadd.xlane.f32.xlu0 %v1180
        %v1285 = vpop.xlane.xlu0 %1284
        %1286 = vadd.xlane.f32.xlu0 %v1181
        %v1287 = vpop.xlane.xlu0 %1286
        %1288 = vadd.xlane.f32.xlu0 %v1182
        %v1289 = vpop.xlane.xlu0 %1288
        %1290 = vadd.xlane.f32.xlu0 %v1183
        %v1291 = vpop.xlane.xlu0 %1290
        %1292 = vadd.xlane.f32.xlu0 %v1184
        %v1293 = vpop.xlane.xlu0 %1292
        %1294 = vadd.xlane.f32.xlu0 %v1185
        %v1295 = vpop.xlane.xlu0 %1294
        %1296 = vadd.xlane.f32.xlu0 %v1186
        %v1297 = vpop.xlane.xlu0 %1296
        %1298 = vadd.xlane.f32.xlu0 %v1187
        %v1299 = vpop.xlane.xlu0 %1298
        %1300 = vadd.xlane.f32.xlu0 %v1188
        %v1301 = vpop.xlane.xlu0 %1300
        %1302 = vadd.xlane.f32.xlu0 %v1189
        %v1303 = vpop.xlane.xlu0 %1302
        %1304 = vadd.xlane.f32.xlu0 %v1190
        %v1305 = vpop.xlane.xlu0 %1304
        %1306 = vadd.xlane.f32.xlu0 %v1191
        %v1307 = vpop.xlane.xlu0 %1306
        %1308 = vadd.xlane.f32.xlu0 %v1192
        %v1309 = vpop.xlane.xlu0 %1308
        %1310 = vadd.xlane.f32.xlu0 %v1193
        %v1311 = vpop.xlane.xlu0 %1310
        %1312 = vadd.xlane.f32.xlu0 %v1194
        %v1313 = vpop.xlane.xlu0 %1312
        %1314 = vadd.xlane.f32.xlu0 %v1195
        %v1315 = vpop.xlane.xlu0 %1314
        %1316 = vadd.xlane.f32.xlu0 %v1196
        %v1317 = vpop.xlane.xlu0 %1316
        %1318 = vadd.xlane.f32.xlu0 %v1197
        %v1319 = vpop.xlane.xlu0 %1318
        %1320 = vadd.xlane.f32.xlu0 %v1198
        %v1321 = vpop.xlane.xlu0 %1320
        %1322 = vadd.xlane.f32.xlu0 %v1199
        %v1323 = vpop.xlane.xlu0 %1322
        %1324 = vadd.xlane.f32.xlu0 %v1200
        %v1325 = vpop.xlane.xlu0 %1324
        %1326 = vadd.xlane.f32.xlu0 %v1201
        %v1327 = vpop.xlane.xlu0 %1326
        %1328 = vadd.xlane.f32.xlu0 %v1202
        %v1329 = vpop.xlane.xlu0 %1328
        %1330 = vadd.xlane.f32.xlu0 %v1203
        %v1331 = vpop.xlane.xlu0 %1330
        %v1396 = vperm.slane %v1205, %v1021
        %v1397 = vadd.s32 %v1021, 4294967288
        %v1398 = vperm.slane %v1207, %v1397
        %vm1399 = vcmask 130112
        %v1400 = vsel %vm1399, %v1398, %v1396
        %v1401 = vadd.s32 %v1021, 4294967280
        %v1402 = vperm.slane %v1209, %v1401
        %vm1403 = vcmask 195712
        %v1404 = vsel %vm1403, %v1402, %v1400
        %v1405 = vadd.s32 %v1021, 4294967272
        %v1406 = vperm.slane %v1211, %v1405
        %vm1407 = vcmask 261312
        %v1408 = vsel %vm1407, %v1406, %v1404
        %v1409 = vadd.s32 %v1021, 4294967264
        %v1410 = vperm.slane %v1213, %v1409
        %vm1411 = vcmask 326912
        %v1412 = vsel %vm1411, %v1410, %v1408
        %v1413 = vadd.s32 %v1021, 4294967256
        %v1414 = vperm.slane %v1215, %v1413
        %vm1415 = vcmask 392512
        %v1416 = vsel %vm1415, %v1414, %v1412
        %v1417 = vadd.s32 %v1021, 4294967248
        %v1418 = vperm.slane %v1217, %v1417
        %vm1419 = vcmask 458112
        %v1420 = vsel %vm1419, %v1418, %v1416
        %v1421 = vadd.s32 %v1021, 4294967240
        %v1422 = vperm.slane %v1219, %v1421
        %vm1423 = vcmask 523712
        %v1424 = vsel %vm1423, %v1422, %v1420
        %v1425 = vperm.slane %v1221, %v1021
        %v1426 = vperm.slane %v1223, %v1397
        %v1427 = vsel %vm1399, %v1426, %v1425
        %v1428 = vperm.slane %v1225, %v1401
        %v1429 = vsel %vm1403, %v1428, %v1427
        %v1430 = vperm.slane %v1227, %v1405
        %v1431 = vsel %vm1407, %v1430, %v1429
        %v1432 = vperm.slane %v1229, %v1409
        %v1433 = vsel %vm1411, %v1432, %v1431
        %v1434 = vperm.slane %v1231, %v1413
        %v1435 = vsel %vm1415, %v1434, %v1433
        %v1436 = vperm.slane %v1233, %v1417
        %v1437 = vsel %vm1419, %v1436, %v1435
        %v1438 = vperm.slane %v1235, %v1421
        %v1439 = vsel %vm1423, %v1438, %v1437
        %v1440 = vperm.slane %v1237, %v1021
        %v1441 = vperm.slane %v1239, %v1397
        %v1442 = vsel %vm1399, %v1441, %v1440
        %v1443 = vperm.slane %v1241, %v1401
        %v1444 = vsel %vm1403, %v1443, %v1442
        %v1445 = vperm.slane %v1243, %v1405
        %v1446 = vsel %vm1407, %v1445, %v1444
        %v1447 = vperm.slane %v1245, %v1409
        %v1448 = vsel %vm1411, %v1447, %v1446
        %v1449 = vperm.slane %v1247, %v1413
        %v1450 = vsel %vm1415, %v1449, %v1448
        %v1451 = vperm.slane %v1249, %v1417
        %v1452 = vsel %vm1419, %v1451, %v1450
        %v1453 = vperm.slane %v1251, %v1421
        %v1454 = vsel %vm1423, %v1453, %v1452
        %v1455 = vperm.slane %v1253, %v1021
        %v1456 = vperm.slane %v1255, %v1397
        %v1457 = vsel %vm1399, %v1456, %v1455
        %v1458 = vperm.slane %v1257, %v1401
        %v1459 = vsel %vm1403, %v1458, %v1457
        %v1460 = vperm.slane %v1259, %v1405
        %v1461 = vsel %vm1407, %v1460, %v1459
        %v1462 = vperm.slane %v1261, %v1409
        %v1463 = vsel %vm1411, %v1462, %v1461
        %v1464 = vperm.slane %v1263, %v1413
        %v1465 = vsel %vm1415, %v1464, %v1463
        %v1466 = vperm.slane %v1265, %v1417
        %v1467 = vsel %vm1419, %v1466, %v1465
        %v1468 = vperm.slane %v1267, %v1421
        %v1469 = vsel %vm1423, %v1468, %v1467
        %v1470 = vperm.slane %v1269, %v1021
        %v1471 = vperm.slane %v1271, %v1397
        %v1472 = vsel %vm1399, %v1471, %v1470
        %v1473 = vperm.slane %v1273, %v1401
        %v1474 = vsel %vm1403, %v1473, %v1472
        %v1475 = vperm.slane %v1275, %v1405
        %v1476 = vsel %vm1407, %v1475, %v1474
        %v1477 = vperm.slane %v1277, %v1409
        %v1478 = vsel %vm1411, %v1477, %v1476
        %v1479 = vperm.slane %v1279, %v1413
        %v1480 = vsel %vm1415, %v1479, %v1478
        %v1481 = vperm.slane %v1281, %v1417
        %v1482 = vsel %vm1419, %v1481, %v1480
        %v1483 = vperm.slane %v1283, %v1421
        %v1484 = vsel %vm1423, %v1483, %v1482
        %v1485 = vperm.slane %v1285, %v1021
        %v1486 = vperm.slane %v1287, %v1397
        %v1487 = vsel %vm1399, %v1486, %v1485
        %v1488 = vperm.slane %v1289, %v1401
        %v1489 = vsel %vm1403, %v1488, %v1487
        %v1490 = vperm.slane %v1291, %v1405
        %v1491 = vsel %vm1407, %v1490, %v1489
        %v1492 = vperm.slane %v1293, %v1409
        %v1493 = vsel %vm1411, %v1492, %v1491
        %v1494 = vperm.slane %v1295, %v1413
        %v1495 = vsel %vm1415, %v1494, %v1493
        %v1496 = vperm.slane %v1297, %v1417
        %v1497 = vsel %vm1419, %v1496, %v1495
        %v1498 = vperm.slane %v1299, %v1421
        %v1499 = vsel %vm1423, %v1498, %v1497
        %v1500 = vperm.slane %v1301, %v1021
        %v1501 = vperm.slane %v1303, %v1397
        %v1502 = vsel %vm1399, %v1501, %v1500
        %v1503 = vperm.slane %v1305, %v1401
        %v1504 = vsel %vm1403, %v1503, %v1502
        %v1505 = vperm.slane %v1307, %v1405
        %v1506 = vsel %vm1407, %v1505, %v1504
        %v1507 = vperm.slane %v1309, %v1409
        %v1508 = vsel %vm1411, %v1507, %v1506
        %v1509 = vperm.slane %v1311, %v1413
        %v1510 = vsel %vm1415, %v1509, %v1508
        %v1511 = vperm.slane %v1313, %v1417
        %v1512 = vsel %vm1419, %v1511, %v1510
        %v1513 = vperm.slane %v1315, %v1421
        %v1514 = vsel %vm1423, %v1513, %v1512
        %v1515 = vperm.slane %v1317, %v1021
        %v1516 = vperm.slane %v1319, %v1397
        %v1517 = vsel %vm1399, %v1516, %v1515
        %v1518 = vperm.slane %v1321, %v1401
        %v1519 = vsel %vm1403, %v1518, %v1517
        %v1520 = vperm.slane %v1323, %v1405
        %v1521 = vsel %vm1407, %v1520, %v1519
        %v1522 = vperm.slane %v1325, %v1409
        %v1523 = vsel %vm1411, %v1522, %v1521
        %v1524 = vperm.slane %v1327, %v1413
        %v1525 = vsel %vm1415, %v1524, %v1523
        %v1526 = vperm.slane %v1329, %v1417
        %v1527 = vsel %vm1419, %v1526, %v1525
        %v1528 = vperm.slane %v1331, %v1421
        %v1529 = vsel %vm1423, %v1528, %v1527
        %v1530 = vsel %vm983, %v1439, %v1424
        %v1531 = vsel %vm985, %v1454, %v1530
        %v1532 = vsel %vm987, %v1469, %v1531
        %v1533 = vsel %vm989, %v1484, %v1532
        %v1534 = vsel %vm991, %v1499, %v1533
        %v1535 = vsel %vm993, %v1514, %v1534
        %v1536 = vsel %vm995, %v1529, %v1535
        %vm1538 = vcmask 523264
        %1539 = vst.msk [vmem:[%s262] sm:$0xff] %vm1538, %v1536
        %s1540 = sand.u32 %s139, 1
        %s1541 = scalar_lea.sflag [#allocation3], %s1540
        %s1542 = sand.u32 %s139, 1
        %s1543 = smul.addr %s1542, 8
        %s1544 = scalar_lea.vmem [#allocation2], %s1543
        %p1545 = scmp.lt.s32.totalorder %s21, 1
        %s1546 = scalar_select %p1545, %s21, 1
        %s1547 = smul.addr %s1546, 8
        %s1548 = scalar_lea.vmem %s6, %s1547
        // Predicated region
        $region41: #{cam_forward.1} parent=39 // pred_check
          %p1549 = pneg %p149
        $region42: #{cam_forward.1} parent=39 // pred_check_branch
          %1551 = sbr.rel (%p1549) target = $region44
        $region43: #{cam_forward.1} parent=39 // pred_region
          %1553 = vsyncadd %s1541, 0
          %s1554 = smul.addr %s21, 8
          %s1555 = scalar_lea.hbm %s5, %s1554
          %s1557 = sshll.u32 %s1544, 4
          %s1558 = int_to_ptr.vmem [resolvable:$true] %s1557
          %s1559 = sshll.u32 %s1555, 4
          %s1560 = int_to_ptr.hbm [resolvable:$true] %s1559
          %1562 = dma.vmem_to_hbm [thread:$0]  %s1558, 128, %s1560, %s1541
        $region44: #{cam_forward.1} parent=39 // pred_fallthru
          _
        // Predicated region
        $region45: #{cam_forward.1} parent=39 // pred_check
          %p1563 = pneg %p175
        $region46: #{cam_forward.1} parent=39 // pred_check_branch
          %1565 = sbr.rel (%p1563) target = $region48
        $region47: #{cam_forward.1} parent=39 // pred_region
          _
        $region48: #{cam_forward.1} parent=39 // pred_fallthru
          _
      $region40: #{cam_forward.1} parent=5 // pred_fallthru
        _
      %p1566 = scmp.le.s32.totalorder 2, %s16
      // Predicated region
      $region49: #{cam_forward.1} parent=5 // pred_check
        %p1567 = pneg %p1566
      $region50: #{cam_forward.1} parent=5 // pred_check_branch
        %1569 = sbr.rel (%p1567) target = $region52
      $region51: #{cam_forward.1} parent=5 // pred_region
        %s1570 = ssub.s32 %s16, 2
        // Predicated region
        $region53: #{cam_forward.1} parent=51 // pred_check
          %p1571 = pneg %p155
        $region54: #{cam_forward.1} parent=51 // pred_check_branch
          %1573 = sbr.rel (%p1571) target = $region56
        $region55: #{cam_forward.1} parent=51 // pred_region
          %s1574 = sand.u32 %s140, 1
          %s1575 = scalar_lea.sflag [#allocation3], %s1574
          %s1576 = sand.u32 %s140, 1
          %s1577 = smul.addr %s1576, 8
          %s1578 = scalar_lea.vmem [#allocation2], %s1577
          %1580 = dma.done %s1575, 128
        $region56: #{cam_forward.1} parent=51 // pred_fallthru
          _
        // Predicated region
        $region57: #{cam_forward.1} parent=51 // pred_check
          %p1581 = pneg %p181
        $region58: #{cam_forward.1} parent=51 // pred_check_branch
          %1583 = sbr.rel (%p1581) target = $region60
        $region59: #{cam_forward.1} parent=51 // pred_region
          %p1584 = scmp.lt.s32.totalorder %s22, 1
          %s1585 = scalar_select %p1584, %s22, 1
          %s1586 = smul.addr %s1585, 8
          %s1587 = scalar_lea.vmem %s6, %s1586
        $region60: #{cam_forward.1} parent=51 // pred_fallthru
          _
      $region52: #{cam_forward.1} parent=5 // pred_fallthru
        _
    $region6: #{cam_forward.1} parent=1 // loop_footer
      %s20 = sadd.s32 1, %s16
    $region7: #{cam_forward.1} parent=1 // loop_footer_branch
      %15 = sbr.rel target = $region3
    $region8: #{cam_forward.1} parent=1 // loop_exit
      _
    %1588 = vsyncpa [#allocation3], 1
    %s1589 = scalar_lea.sflag [#allocation3], 1
    %1590 = vsyncpa %s1589, 1

</llo_original>
